<compile_context>
chip_gen: v6e
topology: v6e:2x2x1
jax: 0.10.0
libtpu: 0.0.40
codegen_flags: <defaults>
</compile_context>

<pallas_src>
import functools

import jax
import jax.numpy as jnp
from jax.experimental import pallas as pl
from jax.experimental.pallas import tpu as pltpu

_LANE = 128
_SUBLANE = 8
_CHUNK_BYTES = 256 * 1024          # target f32 bytes per in-kernel compute chunk


def _round_up(x, m):
    return ((x + m - 1) // m) * m


def _tpu_info_attr(names, default):
    try:
        info = pltpu.get_tpu_info()
    except Exception:
        return default
    for name in names:
        val = getattr(info, name, None)
        if val is None:
            continue
        try:
            val = int(val)
        except (TypeError, ValueError):
            continue
        if val > 0:
            return val
    return default


def _num_tensorcores():
    # 2 on v7x-class parts, 1 on v5e/v6e; safe fallback is 1 (correct everywhere).
    n = _tpu_info_attr(
        ("tensorcores_per_chip", "num_tensorcores", "num_cores", "core_count"), 1)
    return min(max(n, 1), 2)


def _vmem_capacity_bytes():
    # 64 MiB fallback is safe on every generation.
    return _tpu_info_attr(
        ("vmem_capacity_bytes", "vmem_bytes", "vmem_size_bytes"), 64 << 20)


def _ar_acc_kernel(g_ref, l_ref, out_ref, acc_ref, *, d, D, n_rows,
                   tile_r, chunk_r, n_chunks, mask_rows):
    """AR indicator count for one (tile_r, Mc) row-block.

    g_ref, l_ref : (tile_r, Mc) VMEM tiles in the native input dtype
    out_ref      : (8, 128) f32 block holding this parallel slice's hit count
    acc_ref      : (sub, Mc) f32 partial-sum accumulator (sub = 8 normally)
    """
    p = pl.program_id(0)
    i = pl.program_id(1)
    n_inner = pl.num_programs(1)

    @pl.when(i == 0)
    def _():
        acc_ref[...] = jnp.zeros_like(acc_ref)

    mc = g_ref.shape[1]
    sub = acc_ref.shape[0]
    block_base = (p * n_inner + i) * tile_r

    if mask_rows:
        # loop-invariant: hoisted out of the chunk loop
        row_iota = jax.lax.broadcasted_iota(jnp.int32, (chunk_r, mc), 0)

    def chunk_body(c, carry):
        off = c * chunk_r
        if not isinstance(off, int):
            off = pl.multiple_of(off, chunk_r)
        g = g_ref[pl.ds(off, chunk_r), :].astype(jnp.float32)
        lg = l_ref[pl.ds(off, chunk_r), :].astype(jnp.float32)

        err = jnp.abs(g - lg)
        # min(err - rel, err - abs) < 0  <=>  err < max(d*|g|, D)
        allow = jnp.maximum(d * jnp.abs(g), D)
        hit = err < allow
        if mask_rows:
            limit = n_rows - block_base - off     # valid rows in this chunk
            hit = jnp.logical_and(hit, row_iota < limit)
        ind = hit.astype(jnp.float32)

        # fold sublane-groups together with pure VALU adds; tiny VMEM accumulator
        acc_ref[...] += ind.reshape(chunk_r // sub, sub, mc).sum(axis=0)
        return carry

    if n_chunks == 1:
        chunk_body(0, 0)
    else:
        jax.lax.fori_loop(0, n_chunks, chunk_body, 0)

    @pl.when(i == n_inner - 1)
    def _():
        hits = jnp.sum(acc_ref[...])              # single XLU reduce, once
        out_ref[...] = jnp.full(out_ref.shape, hits, dtype=out_ref.dtype)


def ar_acc(g, logits, d=0.2, D=0.02, *, target_block_bytes=None,
           chunk_bytes=_CHUNK_BYTES):
    assert 0.0 < d < 1.0, "Relative allowable error proportion must be in (0, 1)"
    assert 0.0 < D < 1.0, "Absolute allowable error must be in (0, 1)"
    assert g.shape == logits.shape, "g and logits must have the same shape"

    # Sentinel pair that always yields indicator == 0 (|0 - 2| = 2 >= max(0, D))
    PAD_G, PAD_L = 0.0, 2.0

    total = int(g.size)

    if g.ndim == 1:
        # lane-dense repack of the 1-D path; only the ragged tail (< 128 elems
        # of padding) needs sentinel values.
        n_true = g.shape[0]
        lane_pad = (-n_true) % _LANE
        if lane_pad:
            g = jnp.concatenate([g, jnp.full((lane_pad,), PAD_G, g.dtype)])
            logits = jnp.concatenate(
                [logits, jnp.full((lane_pad,), PAD_L, logits.dtype)])
        g = g.reshape(-1, _LANE)
        logits = logits.reshape(-1, _LANE)
    else:
        # mean(dim=1).mean() == sum / numel for uniform shapes; merge leading dims
        g = g.reshape(-1, g.shape[-1])
        logits = logits.reshape(-1, logits.shape[-1])

    R, Mc = g.shape
    itemsize = jnp.dtype(g.dtype).itemsize

    vmem_cap = _vmem_capacity_bytes()
    if target_block_bytes is None:
        # ~12 MiB/input on 128 MiB-VMEM parts (v5e/v6e), ~6 MiB on 64 MiB (v7x)
        target_block_bytes = int(
            min(12 << 20, max(2 << 20, (vmem_cap - (16 << 20)) // 8)))

    # ---------------- tiling (all Python-static) ----------------
    if R >= _SUBLANE:
        max_chunk = (R // _SUBLANE) * _SUBLANE
        chunk_r = chunk_bytes // max(1, Mc * 4)
        chunk_r = max(_SUBLANE, (chunk_r // _SUBLANE) * _SUBLANE)
        chunk_r = min(chunk_r, max_chunk)

        max_block_rows = (R // chunk_r) * chunk_r
        want_rows = max(1, target_block_bytes // max(1, Mc * itemsize))
        n_chunks = max(1, min(want_rows, max_block_rows) // chunk_r)
        tile_r = n_chunks * chunk_r               # multiple of chunk_r, <= R
    else:
        # fewer than 8 rows: a single full-extent row block
        chunk_r = R
        tile_r = R
        n_chunks = 1

    total_blocks = -(-R // tile_r)

    n_par = _num_tensorcores() if total_blocks >= 2 else 1
    if n_par > 1 and total_blocks % n_par != 0 and n_chunks > 1:
        # shave one chunk off the block so the block count splits evenly
        alt_tile = tile_r - chunk_r
        alt_blocks = -(-R // alt_tile)
        if alt_blocks % n_par == 0:
            tile_r, n_chunks, total_blocks = alt_tile, n_chunks - 1, alt_blocks
    if n_par > 1 and total_blocks % n_par != 0:
        n_par = 1                                  # keep every block index valid
    n_inner = total_blocks // n_par

    mask_rows = (n_par * n_inner * tile_r) != R
    sub = _SUBLANE if chunk_r % _SUBLANE == 0 else chunk_r

    # explicit scoped-VMEM budget: 2 inputs x 2 pipeline buffers + small scratch
    block_in_bytes = tile_r * Mc * itemsize
    acc_bytes = sub * Mc * 4
    tmp_bytes = 8 * chunk_r * Mc * 4               # per-chunk f32 temporaries
    vmem_limit = int(4 * block_in_bytes + acc_bytes + tmp_bytes + (4 << 20))
    vmem_limit = max(vmem_limit, 16 << 20)
    vmem_limit = min(vmem_limit, max(vmem_cap - (2 << 20), 16 << 20))

    kernel = functools.partial(
        _ar_acc_kernel, d=float(d), D=float(D), n_rows=R,
        tile_r=tile_r, chunk_r=chunk_r, n_chunks=n_chunks, mask_rows=mask_rows)

    out = pl.pallas_call(
        kernel,
        out_shape=jax.ShapeDtypeStruct((n_par * _SUBLANE, _LANE), jnp.float32),
        grid_spec=pltpu.PrefetchScalarGridSpec(
            num_scalar_prefetch=0,
            grid=(n_par, n_inner),
            in_specs=[
                pl.BlockSpec((tile_r, Mc), lambda p, i: (p * n_inner + i, 0)),
                pl.BlockSpec((tile_r, Mc), lambda p, i: (p * n_inner + i, 0)),
            ],
            out_specs=pl.BlockSpec((_SUBLANE, _LANE), lambda p, i: (p, 0)),
            scratch_shapes=[pltpu.VMEM((sub, Mc), jnp.float32)],
        ),
        compiler_params=pltpu.CompilerParams(
            dimension_semantics=("parallel", "arbitrary"),
            vmem_limit_bytes=vmem_limit,
        ),
    )(g, logits)

    # one partial hit-count per parallel slice (broadcast across its (8,128) block)
    partials = out.reshape(n_par, _SUBLANE, _LANE)[:, 0, 0]
    return jnp.sum(partials) / jnp.float32(total)


class AR_acc:
    """Thin callable wrapper mirroring the PyTorch module's forward."""

    def __call__(self, g, logits, d=0.2, D=0.02):
        return ar_acc(g, logits, d, D)


def _ar_acc_ref(g, logits, d=0.2, D=0.02):
    """Pure-JAX reference matching the PyTorch semantics (f32 compute)."""
    if g.ndim == 1:
        g = g[:, None]
        logits = logits[:, None]
    g = g.astype(jnp.float32)
    logits = logits.astype(jnp.float32)
    rel = d * jnp.abs(g)
    ab = D * jnp.ones_like(g)
    err = jnp.abs(g - logits)
    err_min = jnp.minimum(err - rel, err - ab)
    ind = jnp.where(err_min < 0, jnp.ones_like(err_min), jnp.zeros_like(err_min))
    return ind.mean(axis=1).mean()


if __name__ == "__main__":
    key = jax.random.PRNGKey(0)
    k1, k2 = jax.random.split(key)

    # 1) aligned 2-D f32 case (single block, no masking)
    N, M = 32, 128
    g = jax.random.normal(k1, (N, M), dtype=jnp.float32)
    logits = g + 0.05 * jax.random.normal(k2, (N, M), dtype=jnp.float32)
    out = jax.block_until_ready(ar_acc(g, logits, d=0.2, D=0.02))
    ref = _ar_acc_ref(g, logits, d=0.2, D=0.02)
    assert jnp.allclose(out, ref, atol=1e-6, rtol=1e-6), (out, ref)

    # 2) ragged rows / narrow cols: in-kernel row-mask path, no HBM padding copy
    N2, M2 = 30, 96
    g2 = jax.random.normal(k1, (N2, M2), dtype=jnp.float32)
    l2 = g2 + 0.1 * jax.random.normal(k2, (N2, M2), dtype=jnp.float32)
    out2 = jax.block_until_ready(ar_acc(g2, l2))
    ref2 = _ar_acc_ref(g2, l2)
    assert jnp.allclose(out2, ref2, atol=1e-6, rtol=1e-6), (out2, ref2)

    # 3) multi-block + multi-chunk path (tiny block budget forces the inner loop)
    N3, M3 = 300, 160
    g3 = jax.random.normal(k1, (N3, M3), dtype=jnp.float32)
    l3 = g3 + 0.15 * jax.random.normal(k2, (N3, M3), dtype=jnp.float32)
    out3 = jax.block_until_ready(
        ar_acc(g3, l3, target_block_bytes=16 * 1024, chunk_bytes=4 * 1024))
    ref3 = _ar_acc_ref(g3, l3)
    assert jnp.allclose(out3, ref3, atol=1e-6, rtol=1e-6), (out3, ref3)

    # 4) 1-D case (lane-dense repack; ragged tail -> sentinel pad)
    g1 = jax.random.normal(k1, (200,), dtype=jnp.float32)
    l1 = g1 + 0.3 * jax.random.normal(k2, (200,), dtype=jnp.float32)
    out1 = jax.block_until_ready(ar_acc(g1, l1))
    ref1 = _ar_acc_ref(g1, l1)
    assert jnp.allclose(out1, ref1, atol=1e-6, rtol=1e-6), (out1, ref1)

    # 5) bf16 native-dtype path (half the HBM traffic, f32 compute in-kernel)
    gb = jax.random.normal(k1, (64, 256), dtype=jnp.float32).astype(jnp.bfloat16)
    lb = (gb.astype(jnp.float32)
          + 0.05 * jax.random.normal(k2, (64, 256), dtype=jnp.float32)
          ).astype(jnp.bfloat16)
    outb = jax.block_until_ready(ar_acc(gb, lb))
    refb = _ar_acc_ref(gb, lb)
    assert jnp.allclose(outb, refb, atol=1e-6, rtol=1e-6), (outb, refb)

    print("KERNEL_OK")
</pallas_src>

<mosaic_0001>
module attributes {stable_mosaic.version = 11 : i64} {
  func.func @_ar_acc_kernel(%arg0: i32, %arg1: i32, %arg2: memref<32x128xf32, #tpu.memory_space<vmem>>, %arg3: memref<32x128xf32, #tpu.memory_space<vmem>>, %arg4: memref<8x128xf32, #tpu.memory_space<vmem>>, %arg5: memref<8x128xf32, #tpu.memory_space<vmem>>) attributes {dimension_semantics = [#tpu.dimension_semantics<parallel>, #tpu.dimension_semantics<arbitrary>], iteration_bounds = array<i64: 1, 1>, scalar_prefetch = 0 : i64, scratch_operands = 1 : i64, tpu.core_type = #tpu.core_type<tc>, window_params = [{transform_indices = @transform_0, window_bounds = array<i64: 32, 128>}, {transform_indices = @transform_1, window_bounds = array<i64: 32, 128>}, {transform_indices = @transform_2, window_bounds = array<i64: 8, 128>}]} {
    %c0_i32 = arith.constant 0 : i32
    %0 = arith.cmpi eq, %arg1, %c0_i32 : i32
    %1 = arith.extui %0 : i1 to i32
    %c0_i32_0 = arith.constant 0 : i32
    %2 = arith.cmpi ne, %1, %c0_i32_0 : i32
    scf.if %2 {
      %cst_12 = arith.constant 0.000000e+00 : f32
      %23 = vector.broadcast %cst_12 : f32 to vector<8x128xf32>
      %c0_13 = arith.constant 0 : index
      %c0_14 = arith.constant 0 : index
      %24 = vector.load %arg5[%c0_13, %c0_14] : memref<8x128xf32, #tpu.memory_space<vmem>>, vector<8x128xf32>
      tpu.vector_store %arg5[%c0_13, %c0_14], %23 {strides = array<i32>} : memref<8x128xf32, #tpu.memory_space<vmem>>, vector<8x128xf32>,
    } else {
    }
    %c0 = arith.constant 0 : index
    %c0_1 = arith.constant 0 : index
    %3 = vector.load %arg2[%c0, %c0_1] : memref<32x128xf32, #tpu.memory_space<vmem>>, vector<32x128xf32>
    %c0_2 = arith.constant 0 : index
    %c0_3 = arith.constant 0 : index
    %4 = vector.load %arg3[%c0_2, %c0_3] : memref<32x128xf32, #tpu.memory_space<vmem>>, vector<32x128xf32>
    %5 = arith.subf %3, %4 : vector<32x128xf32>
    %6 = math.absf %5 : vector<32x128xf32>
    %7 = math.absf %3 : vector<32x128xf32>
    %cst = arith.constant 2.000000e-01 : f32
    %8 = vector.broadcast %cst : f32 to vector<32x128xf32>
    %9 = arith.mulf %8, %7 : vector<32x128xf32>
    %cst_4 = arith.constant 2.000000e-02 : f32
    %10 = vector.broadcast %cst_4 : f32 to vector<32x128xf32>
    %11 = arith.maximumf %9, %10 : vector<32x128xf32>
    %12 = arith.cmpf olt, %6, %11 : vector<32x128xf32>
    %13 = arith.extui %12 : vector<32x128xi1> to vector<32x128xi32>
    %14 = arith.sitofp %13 : vector<32x128xi32> to vector<32x128xf32>
    %c0_5 = arith.constant 0 : index
    %c0_6 = arith.constant 0 : index
    %15 = vector.load %arg5[%c0_5, %c0_6] : memref<8x128xf32, #tpu.memory_space<vmem>>, vector<8x128xf32>
    %16 = vector.shape_cast %14 : vector<32x128xf32> to vector<4x8x128xf32>
    %cst_7 = arith.constant dense<0.000000e+00> : vector<8x128xf32>
    %17 = vector.multi_reduction <add>, %16, %cst_7 [0] : vector<4x8x128xf32> to vector<8x128xf32>
    %18 = arith.addf %15, %17 : vector<8x128xf32>
    %c0_8 = arith.constant 0 : index
    %c0_9 = arith.constant 0 : index
    %19 = vector.load %arg5[%c0_8, %c0_9] : memref<8x128xf32, #tpu.memory_space<vmem>>, vector<8x128xf32>
    tpu.vector_store %arg5[%c0_8, %c0_9], %18 {strides = array<i32>} : memref<8x128xf32, #tpu.memory_space<vmem>>, vector<8x128xf32>,
    %c0_i32_10 = arith.constant 0 : i32
    %20 = arith.cmpi eq, %arg1, %c0_i32_10 : i32
    %21 = arith.extui %20 : i1 to i32
    %c0_i32_11 = arith.constant 0 : i32
    %22 = arith.cmpi ne, %21, %c0_i32_11 : i32
    scf.if %22 {
      %c0_12 = arith.constant 0 : index
      %c0_13 = arith.constant 0 : index
      %23 = vector.load %arg5[%c0_12, %c0_13] : memref<8x128xf32, #tpu.memory_space<vmem>>, vector<8x128xf32>
      %24 = vector.shape_cast %23 : vector<8x128xf32> to vector<1x8x128xf32>
      %cst_14 = arith.constant dense<0.000000e+00> : vector<1xf32>
      %25 = vector.multi_reduction <add>, %24, %cst_14 [1, 2] : vector<1x8x128xf32> to vector<1xf32>
      %26 = vector.shape_cast %25 : vector<1xf32> to vector<1x1x1xf32>
      %27 = vector.extract %26[0, 0, 0] : f32 from vector<1x1x1xf32>
      %28 = vector.broadcast %27 : f32 to vector<8x128xf32>
      %c0_15 = arith.constant 0 : index
      %c0_16 = arith.constant 0 : index
      %29 = vector.load %arg4[%c0_15, %c0_16] : memref<8x128xf32, #tpu.memory_space<vmem>>, vector<8x128xf32>
      tpu.vector_store %arg4[%c0_15, %c0_16], %28 {strides = array<i32>} : memref<8x128xf32, #tpu.memory_space<vmem>>, vector<8x128xf32>,
    } else {
    }
    return
  }
  func.func @transform_0(%arg0: i32, %arg1: i32) -> (i32, i32) {
    %c1_i32 = arith.constant 1 : i32
    %0 = arith.muli %arg0, %c1_i32 : i32
    %1 = arith.addi %0, %arg1 : i32
    %c0_i32 = arith.constant 0 : i32
    %c0_i32_0 = arith.constant 0 : i32
    return %1, %c0_i32 : i32, i32
  }
  func.func @transform_1(%arg0: i32, %arg1: i32) -> (i32, i32) {
    %c1_i32 = arith.constant 1 : i32
    %0 = arith.muli %arg0, %c1_i32 : i32
    %1 = arith.addi %0, %arg1 : i32
    %c0_i32 = arith.constant 0 : i32
    %c0_i32_0 = arith.constant 0 : i32
    return %1, %c0_i32 : i32, i32
  }
  func.func @transform_2(%arg0: i32, %arg1: i32) -> (i32, i32) {
    %c0_i32 = arith.constant 0 : i32
    %c0_i32_0 = arith.constant 0 : i32
    return %arg0, %c0_i32 : i32, i32
  }
}

</mosaic_0001>

<llo_original>
// kernel: tpu_custom_call.1
$region0: #{tpu_custom_call.1}
  #allocation0 [shape = 'u32[]', space=smem, size = 0x4, offset = 0x4, fixed_abs, tag = 'smem constant byte address 0x4 - core index']
  #allocation1 [shape = 'u32[144,128]{1,0:T(1,128)}', space=vmem, size = 0x12000, scoped, tag = 'internal scratch']
  #allocation2 [shape = 'f32[8,128]{1,0:T(8,128)}', space=vmem, size = 0x1000, scoped, tag = 'scratch operand']
  %s0 = inlined_call_operand.hbm [shape: f32[32,128], index: 0, kind: input, shape index: {}]
  %s1 = inlined_call_operand.hbm [shape: f32[32,128], index: 1, kind: input, shape index: {}]
  %s2 = inlined_call_operand.hbm [shape: f32[8,128], index: 2, kind: output, shape index: {}]
  %s3 = sld [smem:[#allocation0]]
  $region34: #{tpu_custom_call.1} parent=0
    _
  %s5 = ssub.s32 1, %s3
  %s6 = scalar_select 0, %s5, %s3
  $region1: #{tpu_custom_call.1} parent=0
    #allocation3 [shape = 'u8[16384]{0}', space=vmem, size = 0x4000, scoped, tag = 'input window, operand 0, single buffered']
    #allocation4 [shape = 's32[1]{0}', space=sflag, size = 0x4, scoped, tag = 'scoped memory for tpu_custom_call.1']
    #allocation5 [shape = 's32[1]{0}', space=sflag, size = 0x4, scoped, tag = 'scoped memory for tpu_custom_call.1']
    #allocation6 [shape = 'u8[16384]{0}', space=vmem, size = 0x4000, scoped, tag = 'input window, operand 1, single buffered']
    #allocation7 [shape = 's32[1]{0}', space=sflag, size = 0x4, scoped, tag = 'scoped memory for tpu_custom_call.1']
    #allocation8 [shape = 'u8[4096]{0}', space=vmem, size = 0x1000, scoped, tag = 'output window, operand 0, single buffered']
    %7 = vsyncpa [#allocation4], 0
    %8 = vsyncpa [#allocation7], 0
    %9 = vsyncpa [#allocation5], 0
    // Predicated region
    $region2: #{tpu_custom_call.1} parent=1 // pred_check
      _
    $region3: #{tpu_custom_call.1} parent=1 // pred_check_branch
      %11 = sbr.rel (0) target = $region5
    $region4: #{tpu_custom_call.1} parent=1 // pred_region
      %s12 = sadd.s32 0, 0
      %s13 = smul.u32 4, %s12
      %s15 = ssub.s32 512, 512
      %16 = vsyncadd [#allocation4], %s15
      %s17 = smul.addr %s13, 128
      %s18 = scalar_lea.hbm %s0, %s17
      %s19 = sshll.u32 [#allocation3], 4
      %s20 = int_to_ptr.vmem [resolvable:$true] %s19
      %25 = dma.hbm_to_vmem [thread:$0]  %s18, 512, %s20, [#allocation4], 128, 128, 8
    $region5: #{tpu_custom_call.1} parent=1 // pred_fallthru
      _
    // Predicated region
    $region6: #{tpu_custom_call.1} parent=1 // pred_check
      _
    $region7: #{tpu_custom_call.1} parent=1 // pred_check_branch
      %27 = sbr.rel (0) target = $region9
    $region8: #{tpu_custom_call.1} parent=1 // pred_region
      %s28 = sadd.s32 0, 0
      %s29 = smul.u32 4, %s28
      %s31 = ssub.s32 512, 512
      %32 = vsyncadd [#allocation7], %s31
      %s33 = smul.addr %s29, 128
      %s34 = scalar_lea.hbm %s1, %s33
      %s35 = sshll.u32 [#allocation6], 4
      %s36 = int_to_ptr.vmem [resolvable:$true] %s35
      %41 = dma.hbm_to_vmem [thread:$0]  %s34, 512, %s36, [#allocation7], 128, 128, 8
    $region9: #{tpu_custom_call.1} parent=1 // pred_fallthru
      _
    // Predicated region
    $region10: #{tpu_custom_call.1} parent=1 // pred_check
      _
    $region11: #{tpu_custom_call.1} parent=1 // pred_check_branch
      %43 = sbr.rel (0) target = $region13
    $region12: #{tpu_custom_call.1} parent=1 // pred_region
      %44 = dma.done [#allocation4], 512
    $region13: #{tpu_custom_call.1} parent=1 // pred_fallthru
      _
    // Predicated region
    $region14: #{tpu_custom_call.1} parent=1 // pred_check
      _
    $region15: #{tpu_custom_call.1} parent=1 // pred_check_branch
      %46 = sbr.rel (0) target = $region17
    $region16: #{tpu_custom_call.1} parent=1 // pred_region
      %47 = dma.done [#allocation7], 512
    $region17: #{tpu_custom_call.1} parent=1 // pred_fallthru
      _
    %s48 = sadd.s32 0, 0
    %s49 = smul.u32 4, %s48
    %s50 = sadd.s32 0, 0
    %s51 = smul.u32 4, %s50
    %p52 = scmp.eq.s32.totalorder 0, 0
    // Predicated region
    $region18: #{tpu_custom_call.1} parent=1 // pred_check
      %p53 = pneg %p52
    $region19: #{tpu_custom_call.1} parent=1 // pred_check_branch
      %55 = sbr.rel (%p53) target = $region21
    $region20: #{tpu_custom_call.1} parent=1 // pred_region
      %56 = vst [vmem:[#allocation2] sm:$0xff] 0.0
    $region21: #{tpu_custom_call.1} parent=1 // pred_fallthru
      _
    %v57 = vld [vmem:[#allocation3] sm:$0xff]
    %v58 = vld [vmem:[#allocation3 + $0x8] sm:$0xff]
    %v59 = vld [vmem:[#allocation3 + $0x10] sm:$0xff]
    %v60 = vld [vmem:[#allocation3 + $0x18] sm:$0xff]
    %v61 = vld [vmem:[#allocation6] sm:$0xff]
    %v62 = vld [vmem:[#allocation6 + $0x8] sm:$0xff]
    %v63 = vld [vmem:[#allocation6 + $0x10] sm:$0xff]
    %v64 = vld [vmem:[#allocation6 + $0x18] sm:$0xff]
    %v65 = vsub.f32 %v57, %v61
    %v66 = vsub.f32 %v58, %v62
    %v67 = vsub.f32 %v59, %v63
    %v68 = vsub.f32 %v60, %v64
    %v69 = vand.u32 2147483647, %v65
    %v70 = vand.u32 2147483647, %v66
    %v71 = vand.u32 2147483647, %v67
    %v72 = vand.u32 2147483647, %v68
    %v73 = vand.u32 2147483647, %v57
    %v74 = vand.u32 2147483647, %v58
    %v75 = vand.u32 2147483647, %v59
    %v76 = vand.u32 2147483647, %v60
    %v77 = vmul.f32 %v73, 0.2
    %v78 = vmul.f32 %v74, 0.2
    %v79 = vmul.f32 %v75, 0.2
    %v80 = vmul.f32 %v76, 0.2
    %v81 = vmax.f32 %v77, 0.02
    %v82 = vmax.f32 %v78, 0.02
    %v83 = vmax.f32 %v79, 0.02
    %v84 = vmax.f32 %v80, 0.02
    %vm85 = vcmp.lt.f32.partialorder %v69, %v81
    %vm86 = vcmp.lt.f32.partialorder %v70, %v82
    %vm87 = vcmp.lt.f32.partialorder %v71, %v83
    %vm88 = vcmp.lt.f32.partialorder %v72, %v84
    %v89 = vsel %vm85, 1, 0
    %v90 = vsel %vm86, 1, 0
    %v91 = vsel %vm87, 1, 0
    %v92 = vsel %vm88, 1, 0
    %v93 = vcvt.s32.f32 %v89
    %v94 = vcvt.s32.f32 %v90
    %v95 = vcvt.s32.f32 %v91
    %v96 = vcvt.s32.f32 %v92
    %v97 = vld [vmem:[#allocation2] sm:$0xff]
    %v98 = vadd.f32 %v93, %v94
    %v99 = vadd.f32 %v98, %v95
    %v100 = vadd.f32 %v99, %v96
    %v101 = vadd.f32 %v97, %v100
    %102 = vst [vmem:[#allocation2] sm:$0xff] %v101
    // Predicated region
    $region22: #{tpu_custom_call.1} parent=1 // pred_check
      %p103 = pneg %p52
    $region23: #{tpu_custom_call.1} parent=1 // pred_check_branch
      %105 = sbr.rel (%p103) target = $region25
    $region24: #{tpu_custom_call.1} parent=1 // pred_region
      %v106 = vld [vmem:[#allocation2] sm:$0xff]
      %107 = vadd.xlane.f32.xlu0 %v106
      %v108 = vpop.xlane.xlu0 %107
      %v109 = vrot.slane %v108, 4
      %v110 = vadd.f32 %v108, %v109
      %v111 = vrot.slane %v110, 2
      %v112 = vadd.f32 %v110, %v111
      %v113 = vrot.slane %v112, 1
      %v114 = vadd.f32 %v112, %v113
      %s115 = vtos %v114
      %v116 = vstv %s115
      %117 = vst [vmem:[#allocation8] sm:$0xff] %v116
    $region25: #{tpu_custom_call.1} parent=1 // pred_fallthru
      _
    // Predicated region
    $region26: #{tpu_custom_call.1} parent=1 // pred_check
      _
    $region27: #{tpu_custom_call.1} parent=1 // pred_check_branch
      %119 = sbr.rel (0) target = $region29
    $region28: #{tpu_custom_call.1} parent=1 // pred_region
      %s121 = ssub.s32 128, 128
      %122 = vsyncadd [#allocation5], %s121
      %s124 = sshll.u32 [#allocation8], 4
      %s125 = int_to_ptr.vmem [resolvable:$true] %s124
      %127 = dma.vmem_to_hbm [thread:$0]  %s125, 128, %s2, [#allocation5]
    $region29: #{tpu_custom_call.1} parent=1 // pred_fallthru
      _
    // Predicated region
    $region30: #{tpu_custom_call.1} parent=1 // pred_check
      _
    $region31: #{tpu_custom_call.1} parent=1 // pred_check_branch
      %129 = sbr.rel (0) target = $region33
    $region32: #{tpu_custom_call.1} parent=1 // pred_region
      %130 = dma.done [#allocation5], 128
    $region33: #{tpu_custom_call.1} parent=1 // pred_fallthru
      _
    %131 = vsyncpa [#allocation4], 1
    %132 = vsyncpa [#allocation7], 1
    %133 = vsyncpa [#allocation5], 1

</llo_original>
